<compile_context>
chip_gen: v7x
topology: tpu7x:2x2x1
jax: 0.10.0
libtpu: 0.0.40
codegen_flags: <defaults>
</compile_context>

<pallas_src>
import functools
import math

import jax
import jax.numpy as jnp
from jax.experimental import pallas as pl
from jax.experimental.pallas import tpu as pltpu


# ----------------------------------------------------------------------------
# Parameter setup (plain JAX) -- deterministic, mirrors the torch `pe` buffer.
# Returned as (max_len, d_model); the torch buffer's size-1 batch axis is
# dropped (the broadcast over batch happens inside the kernel instead).
# ----------------------------------------------------------------------------
def make_positional_encoding(max_len: int, d_model: int, dtype=jnp.float32):
    position = jnp.arange(max_len, dtype=jnp.float32)[:, None]              # (L, 1)
    div_term = jnp.exp(
        jnp.arange(0, d_model, 2, dtype=jnp.float32) * (-math.log(10000.0) / d_model)
    )                                                                        # (D/2,)
    pe = jnp.zeros((max_len, d_model), dtype=jnp.float32)
    pe = pe.at[:, 0::2].set(jnp.sin(position * div_term))
    pe = pe.at[:, 1::2].set(jnp.cos(position * div_term[: d_model // 2]))
    return pe.astype(dtype)


# ----------------------------------------------------------------------------
# Pallas kernel: per-seq-tile broadcast add (+ optional inverted dropout).
# ----------------------------------------------------------------------------
def _pos_enc_kernel(seed_ref, x_ref, pe_ref, o_ref, *, p, training):
    x = x_ref[...]                                  # (tS, B, D)
    pe = pe_ref[...]                                # (tS, D)
    y = x + pe[:, None, :]                          # broadcast over the batch axis

    if training and p > 0.0:
        # Inverted dropout with the TPU hardware PRNG; seed offset per grid
        # tile so every tile draws an independent mask.
        pltpu.prng_seed(seed_ref[0] + pl.program_id(0))
        bits = pltpu.bitcast(pltpu.prng_random_bits(y.shape), jnp.uint32)
        keep_prob = 1.0 - float(p)
        thresh = jnp.uint32(min(int(keep_prob * 4294967296.0), 0xFFFFFFFF))
        keep = bits < thresh                        # integer compare, no f32 chain
        y = jnp.where(keep, y * jnp.asarray(1.0 / keep_prob, y.dtype),
                      jnp.zeros_like(y))
        # TODO(synk): cannot bit-match torch.nn.Dropout's RNG stream, only its
        # distribution / inverted-scaling semantics.

    o_ref[...] = y.astype(o_ref.dtype)


# ----------------------------------------------------------------------------
# Wrapper: tiling + pallas_call plumbing.
# ----------------------------------------------------------------------------
def positional_encoder(x, pe, *, p=0.1, training=False, seed=0, tile_seq=None):
    """x: (seq_len, batch, d_model); pe: (max_len, d_model) with max_len >= seq_len."""
    seq_len, batch, d_model = x.shape
    if pe.dtype != x.dtype:
        pe = pe.astype(x.dtype)                     # keep the whole stream in x's dtype

    itemsize = jnp.dtype(x.dtype).itemsize
    row_bytes = max(1, batch * d_model * itemsize)

    if tile_seq is not None:
        tile_s = int(tile_seq)
    elif seq_len >= 8:
        # Biggest multiple-of-8 tile whose x slab is ~2 MiB.
        tile_s = max(8, ((2 << 20) // row_bytes) // 8 * 8)
        tile_s = min(tile_s, (seq_len // 8) * 8)
    else:
        tile_s = seq_len

    if tile_s % 8 != 0:
        # Very short sequences / odd manual tiles: fall back to one full-extent
        # block with pe sliced so block dims equal array dims ((8,128) rule).
        tile_s = seq_len
        pe = pe[:seq_len]

    num_tiles = pl.cdiv(seq_len, tile_s)
    seed_arr = jnp.asarray([seed], dtype=jnp.int32)

    kernel = functools.partial(_pos_enc_kernel, p=float(p), training=bool(training))

    return pl.pallas_call(
        kernel,
        out_shape=jax.ShapeDtypeStruct(x.shape, x.dtype),
        grid_spec=pltpu.PrefetchScalarGridSpec(
            num_scalar_prefetch=1,                  # seed scalar -> SMEM
            grid=(num_tiles,),
            in_specs=[
                pl.BlockSpec((tile_s, batch, d_model), lambda i, s: (i, 0, 0)),
                pl.BlockSpec((tile_s, d_model), lambda i, s: (i, 0)),
            ],
            out_specs=pl.BlockSpec((tile_s, batch, d_model), lambda i, s: (i, 0, 0)),
        ),
        compiler_params=pltpu.CompilerParams(
            dimension_semantics=("parallel",),      # shard tiles across v7x's 2 TCs
        ),
    )(seed_arr, x, pe)


# ----------------------------------------------------------------------------
# Demo / correctness check.
# ----------------------------------------------------------------------------
if __name__ == "__main__":
    seq_len, batch, d_model = 64, 2, 128
    max_len = 128                      # small stand-in for the module default 5000

    key = jax.random.PRNGKey(0)
    x = jax.random.normal(key, (seq_len, batch, d_model), dtype=jnp.float32)
    pe = make_positional_encoding(max_len, d_model)

    # Pure-JAX reference (eval mode: dropout = identity, as in module.eval()).
    ref = x + pe[:seq_len][:, None, :]

    # 1) Explicit tiling -> exercises the 4-tile pipelined grid.
    out = positional_encoder(x, pe, p=0.1, training=False, tile_seq=16)
    out = jax.block_until_ready(out)
    assert out.shape == x.shape and out.dtype == x.dtype
    assert jnp.allclose(out, ref, atol=1e-6, rtol=1e-6)

    # 2) Auto tile selection (whole seq fits one ~2 MiB tile at these shapes).
    out2 = jax.block_until_ready(positional_encoder(x, pe, p=0.1, training=False))
    assert jnp.allclose(out2, ref, atol=1e-6, rtol=1e-6)

    print("KERNEL_OK")
</pallas_src>

<mosaic_0001>
module attributes {stable_mosaic.version = 11 : i64} {
  func.func @_pos_enc_kernel(%arg0: i32, %arg1: memref<1xi32, #tpu.memory_space<smem>>, %arg2: memref<16x2x128xf32, #tpu.memory_space<vmem>>, %arg3: memref<16x128xf32, #tpu.memory_space<vmem>>, %arg4: memref<16x2x128xf32, #tpu.memory_space<vmem>>) attributes {dimension_semantics = [#tpu.dimension_semantics<parallel>], iteration_bounds = array<i64: 4>, scalar_prefetch = 1 : i64, scratch_operands = 0 : i64, tpu.core_type = #tpu.core_type<tc>, window_params = [{transform_indices = @transform_0, window_bounds = array<i64: 16, 2, 128>}, {transform_indices = @transform_1, window_bounds = array<i64: 16, 128>}, {transform_indices = @transform_2, window_bounds = array<i64: 16, 2, 128>}]} {
    %c0 = arith.constant 0 : index
    %c0_0 = arith.constant 0 : index
    %c0_1 = arith.constant 0 : index
    %0 = vector.load %arg2[%c0, %c0_0, %c0_1] : memref<16x2x128xf32, #tpu.memory_space<vmem>>, vector<16x2x128xf32>
    %c0_2 = arith.constant 0 : index
    %c0_3 = arith.constant 0 : index
    %1 = vector.load %arg3[%c0_2, %c0_3] : memref<16x128xf32, #tpu.memory_space<vmem>>, vector<16x128xf32>
    %2 = vector.shape_cast %1 : vector<16x128xf32> to vector<16x1x128xf32>
    %3 = vector.broadcast %2 : vector<16x1x128xf32> to vector<16x2x128xf32>
    %4 = arith.addf %0, %3 : vector<16x2x128xf32>
    %c0_4 = arith.constant 0 : index
    %c0_5 = arith.constant 0 : index
    %c0_6 = arith.constant 0 : index
    %5 = vector.load %arg4[%c0_4, %c0_5, %c0_6] : memref<16x2x128xf32, #tpu.memory_space<vmem>>, vector<16x2x128xf32>
    tpu.vector_store %arg4[%c0_4, %c0_5, %c0_6], %4 {strides = array<i32>} : memref<16x2x128xf32, #tpu.memory_space<vmem>>, vector<16x2x128xf32>,
    return
  }
  func.func @transform_0(%arg0: i32, %arg1: memref<1xi32, #tpu.memory_space<smem>>) -> (i32, i32, i32) {
    %c0_i32 = arith.constant 0 : i32
    %c0_i32_0 = arith.constant 0 : i32
    %c0_i32_1 = arith.constant 0 : i32
    return %arg0, %c0_i32, %c0_i32_0 : i32, i32, i32
  }
  func.func @transform_1(%arg0: i32, %arg1: memref<1xi32, #tpu.memory_space<smem>>) -> (i32, i32) {
    %c0_i32 = arith.constant 0 : i32
    %c0_i32_0 = arith.constant 0 : i32
    return %arg0, %c0_i32 : i32, i32
  }
  func.func @transform_2(%arg0: i32, %arg1: memref<1xi32, #tpu.memory_space<smem>>) -> (i32, i32, i32) {
    %c0_i32 = arith.constant 0 : i32
    %c0_i32_0 = arith.constant 0 : i32
    %c0_i32_1 = arith.constant 0 : i32
    return %arg0, %c0_i32, %c0_i32_0 : i32, i32, i32
  }
}

</mosaic_0001>

<llo_original>
// kernel: tpu_custom_call.1
$region0: #{tpu_custom_call.1}
  #allocation0 [shape = 'u32[]', space=smem, size = 0x4, offset = 0x4, fixed_abs, tag = 'smem constant byte address 0x4 - core index']
  #allocation1 [shape = 'u32[144,128]{1,0:T(1,128)}', space=vmem, size = 0x12000, scoped, tag = 'internal scratch']
  #allocation2 [shape = 's32[1]{0}', space=sflag, size = 0x4, scoped, tag = 'scoped memory for tpu_custom_call.1']
  #allocation3 [shape = 's32[1]{0:T(128)S(6)}', space=smem, size = 0x200, scoped, tag = 'prefetched SMEM operand 0']
  %s0 = inlined_call_operand.<no memory space> [shape: s32[1], index: 0, kind: input, shape index: {}]
  %s1 = inlined_call_operand.hbm [shape: f32[64,2,128], index: 1, kind: input, shape index: {}]
  %s2 = inlined_call_operand.hbm [shape: f32[128,128], index: 2, kind: input, shape index: {}]
  %s3 = inlined_call_operand.hbm [shape: f32[64,2,128], index: 3, kind: output, shape index: {}]
  %s4 = sld [smem:[#allocation0]]
  $region49: #{tpu_custom_call.1} parent=0
    _
  %s6 = ssub.s32 1, %s4
  %s7 = scalar_select 0, %s6, %s4
  %8 = sst [smem:[#allocation3]] %s0
  $region1: #{tpu_custom_call.1} parent=0
    #allocation4 [shape = 'u8[32768]{0}', space=vmem, size = 0x8000, scoped, tag = 'input window, operand 1']
    #allocation5 [shape = 's32[2]{0}', space=sflag, size = 0x8, scoped, tag = 'scoped memory for tpu_custom_call.1']
    #allocation6 [shape = 's32[2]{0}', space=sflag, size = 0x8, scoped, tag = 'scoped memory for tpu_custom_call.1']
    #allocation7 [shape = 'u8[16384]{0}', space=vmem, size = 0x4000, scoped, tag = 'input window, operand 2']
    #allocation8 [shape = 's32[2]{0}', space=sflag, size = 0x8, scoped, tag = 'scoped memory for tpu_custom_call.1']
    #allocation9 [shape = 'u8[32768]{0}', space=vmem, size = 0x8000, scoped, tag = 'output window, operand 0']
    %9 = vsyncpa [#allocation5], 0
    %s10 = scalar_lea.sflag [#allocation5], 1
    %11 = vsyncpa %s10, 0
    %12 = vsyncpa [#allocation8], 0
    %s13 = scalar_lea.sflag [#allocation8], 1
    %14 = vsyncpa %s13, 0
    %15 = vsyncpa [#allocation6], 0
    %s16 = scalar_lea.sflag [#allocation6], 1
    %17 = vsyncpa %s16, 0
    loop: start=0, step=1, limit=6
    $region2: #{tpu_custom_call.1} parent=1 // loop_pre_header
      _
    $region3: #{tpu_custom_call.1} parent=1 // loop_header
      %s19 = sphi 0, %s23
      %p20 = scmp.ge.s32.totalorder %s19, 6
      %s29 = sphi 0, %s31
      %s32 = sphi 0, %s29
      %s33 = sphi 0, %s32
      %s49 = sphi 0, %s33
      %s55 = sphi 0, %s57
      %s58 = sphi 0, %s55
      %s59 = sphi 0, %s58
      %s75 = sphi 0, %s59
      %s81 = sphi 0, %s83
      %s84 = sphi 0, %s81
      %s85 = sphi 0, %s84
      %s101 = sphi 0, %s85
    $region4: #{tpu_custom_call.1} parent=1 // loop_header_branch
      %22 = sbr.rel (%p20) target = $region8
    $region5: #{tpu_custom_call.1} parent=1 // loop_body
      %s24 = ssub.s32 %s19, 1
      %s25 = ssub.s32 %s19, 2
      %s26 = sadd.s32 %s19, 1
      %s27 = ssub.s32 %s19, %s26
      %p28 = scmp.eq.s32.totalorder %s27, 0
      %s30 = sadd.s32 %s29, 1
      %s31 = scalar_select %p28, %s29, %s30
      %p34 = pneg %p28
      %p35 = scmp.eq.s32.totalorder %s19, 3
      %p36 = por %p34, %p35
      %p37 = scmp.ne.s32.totalorder %s29, %s32
      %p38 = scmp.eq.s32.totalorder %s19, 0
      %p39 = por %p37, %p38
      %p40 = scmp.ne.s32.totalorder %s29, %s32
      %p41 = scmp.eq.s32.totalorder %s24, 3
      %p42 = por %p40, %p41
      %p43 = scmp.ne.s32.totalorder %s32, %s33
      %p44 = scmp.eq.s32.totalorder %s24, 0
      %p45 = por %p43, %p44
      %p46 = scmp.ne.s32.totalorder %s32, %s33
      %p47 = scmp.eq.s32.totalorder %s25, 3
      %p48 = por %p46, %p47
      %p50 = scmp.ne.s32.totalorder %s33, %s49
      %p51 = scmp.eq.s32.totalorder %s25, 0
      %p52 = por %p50, %p51
      %s53 = ssub.s32 %s19, %s26
      %p54 = scmp.eq.s32.totalorder %s53, 0
      %s56 = sadd.s32 %s55, 1
      %s57 = scalar_select %p54, %s55, %s56
      %p60 = pneg %p54
      %p61 = scmp.eq.s32.totalorder %s19, 3
      %p62 = por %p60, %p61
      %p63 = scmp.ne.s32.totalorder %s55, %s58
      %p64 = scmp.eq.s32.totalorder %s19, 0
      %p65 = por %p63, %p64
      %p66 = scmp.ne.s32.totalorder %s55, %s58
      %p67 = scmp.eq.s32.totalorder %s24, 3
      %p68 = por %p66, %p67
      %p69 = scmp.ne.s32.totalorder %s58, %s59
      %p70 = scmp.eq.s32.totalorder %s24, 0
      %p71 = por %p69, %p70
      %p72 = scmp.ne.s32.totalorder %s58, %s59
      %p73 = scmp.eq.s32.totalorder %s25, 3
      %p74 = por %p72, %p73
      %p76 = scmp.ne.s32.totalorder %s59, %s75
      %p77 = scmp.eq.s32.totalorder %s25, 0
      %p78 = por %p76, %p77
      %s79 = ssub.s32 %s19, %s26
      %p80 = scmp.eq.s32.totalorder %s79, 0
      %s82 = sadd.s32 %s81, 1
      %s83 = scalar_select %p80, %s81, %s82
      %p86 = pneg %p80
      %p87 = scmp.eq.s32.totalorder %s19, 3
      %p88 = por %p86, %p87
      %p89 = scmp.ne.s32.totalorder %s81, %s84
      %p90 = scmp.eq.s32.totalorder %s19, 0
      %p91 = por %p89, %p90
      %p92 = scmp.ne.s32.totalorder %s81, %s84
      %p93 = scmp.eq.s32.totalorder %s24, 3
      %p94 = por %p92, %p93
      %p95 = scmp.ne.s32.totalorder %s84, %s85
      %p96 = scmp.eq.s32.totalorder %s24, 0
      %p97 = por %p95, %p96
      %p98 = scmp.ne.s32.totalorder %s84, %s85
      %p99 = scmp.eq.s32.totalorder %s25, 3
      %p100 = por %p98, %p99
      %p102 = scmp.ne.s32.totalorder %s85, %s101
      %p103 = scmp.eq.s32.totalorder %s25, 0
      %p104 = por %p102, %p103
      %p105 = scmp.le.s32.totalorder 1, %s19
      %p106 = scmp.lt.s32.totalorder %s19, 5
      %p107 = pnand %p105, %p106
      %p108 = pneg %p107
      // Predicated region
      $region9: #{tpu_custom_call.1} parent=5 // pred_check
        _
      $region10: #{tpu_custom_call.1} parent=5 // pred_check_branch
        %110 = sbr.rel (%p107) target = $region12
      $region11: #{tpu_custom_call.1} parent=5 // pred_region
        %s111 = ssub.s32 %s19, 1
      $region12: #{tpu_custom_call.1} parent=5 // pred_fallthru
        _
      %p112 = scmp.lt.s32.totalorder %s19, 4
      // Predicated region
      $region13: #{tpu_custom_call.1} parent=5 // pred_check
        %p113 = pneg %p112
      $region14: #{tpu_custom_call.1} parent=5 // pred_check_branch
        %115 = sbr.rel (%p113) target = $region16
      $region15: #{tpu_custom_call.1} parent=5 // pred_region
        // Predicated region
        $region17: #{tpu_custom_call.1} parent=15 // pred_check
          %p116 = pneg %p39
        $region18: #{tpu_custom_call.1} parent=15 // pred_check_branch
          %118 = sbr.rel (%p116) target = $region20
        $region19: #{tpu_custom_call.1} parent=15 // pred_region
          %s119 = sand.u32 %s29, 1
          %s120 = scalar_lea.sflag [#allocation5], %s119
          %s121 = sand.u32 %s29, 1
          %s122 = smul.addr %s121, 32
          %s123 = scalar_lea.vmem [#allocation4], %s122
          %s124 = smul.u32 16, %s19
          %s126 = ssub.s32 512, 512
          %127 = vsyncadd %s120, %s126
          %s128 = smul.addr %s124, 32
          %s129 = scalar_lea.hbm %s1, %s128
          %s130 = sshll.u32 %s123, 4
          %s131 = int_to_ptr.vmem [resolvable:$true] %s130
          %136 = dma.hbm_to_vmem [thread:$0]  %s129, 512, %s131, %s120, 32, 32, 2
        $region20: #{tpu_custom_call.1} parent=15 // pred_fallthru
          _
        // Predicated region
        $region21: #{tpu_custom_call.1} parent=15 // pred_check
          %p137 = pneg %p65
        $region22: #{tpu_custom_call.1} parent=15 // pred_check_branch
          %139 = sbr.rel (%p137) target = $region24
        $region23: #{tpu_custom_call.1} parent=15 // pred_region
          %s140 = sand.u32 %s55, 1
          %s141 = scalar_lea.sflag [#allocation8], %s140
          %s142 = sand.u32 %s55, 1
          %s143 = smul.addr %s142, 16
          %s144 = scalar_lea.vmem [#allocation7], %s143
          %s145 = smul.u32 2, %s19
          %s147 = ssub.s32 256, 256
          %148 = vsyncadd %s141, %s147
          %s149 = smul.addr %s145, 128
          %s150 = scalar_lea.hbm %s2, %s149
          %s151 = sshll.u32 %s144, 4
          %s152 = int_to_ptr.vmem [resolvable:$true] %s151
          %157 = dma.hbm_to_vmem [thread:$0]  %s150, 256, %s152, %s141, 128, 128, 8
        $region24: #{tpu_custom_call.1} parent=15 // pred_fallthru
          _
      $region16: #{tpu_custom_call.1} parent=5 // pred_fallthru
        _
      %p158 = scmp.le.s32.totalorder 1, %s19
      %p159 = scmp.lt.s32.totalorder %s19, 5
      %p160 = pnand %p158, %p159
      %p161 = pneg %p160
      // Predicated region
      $region25: #{tpu_custom_call.1} parent=5 // pred_check
        _
      $region26: #{tpu_custom_call.1} parent=5 // pred_check_branch
        %163 = sbr.rel (%p160) target = $region28
      $region27: #{tpu_custom_call.1} parent=5 // pred_region
        %s164 = ssub.s32 %s19, 1
        %s165 = sand.u32 %s32, 1
        %s166 = scalar_lea.sflag [#allocation5], %s165
        %s167 = sand.u32 %s32, 1
        %s168 = smul.addr %s167, 32
        %s169 = scalar_lea.vmem [#allocation4], %s168
        // Predicated region
        $region29: #{tpu_custom_call.1} parent=27 // pred_check
          %p170 = pneg %p45
        $region30: #{tpu_custom_call.1} parent=27 // pred_check_branch
          %172 = sbr.rel (%p170) target = $region32
        $region31: #{tpu_custom_call.1} parent=27 // pred_region
          %173 = dma.done %s166, 512
        $region32: #{tpu_custom_call.1} parent=27 // pred_fallthru
          _
        %s174 = sand.u32 %s58, 1
        %s175 = scalar_lea.sflag [#allocation8], %s174
        %s176 = sand.u32 %s58, 1
        %s177 = smul.addr %s176, 16
        %s178 = scalar_lea.vmem [#allocation7], %s177
        // Predicated region
        $region33: #{tpu_custom_call.1} parent=27 // pred_check
          %p179 = pneg %p71
        $region34: #{tpu_custom_call.1} parent=27 // pred_check_branch
          %181 = sbr.rel (%p179) target = $region36
        $region35: #{tpu_custom_call.1} parent=27 // pred_region
          %182 = dma.done %s175, 256
        $region36: #{tpu_custom_call.1} parent=27 // pred_fallthru
          _
        %s183 = sand.u32 %s32, 1
        %s184 = scalar_lea.sflag [#allocation5], %s183
        %s185 = sand.u32 %s32, 1
        %s186 = smul.addr %s185, 32
        %s187 = scalar_lea.vmem [#allocation4], %s186
        %p188 = pneg %p45
        %p189 = pneg %p42
        %s190 = sand.u32 %s58, 1
        %s191 = scalar_lea.sflag [#allocation8], %s190
        %s192 = sand.u32 %s58, 1
        %s193 = smul.addr %s192, 16
        %s194 = scalar_lea.vmem [#allocation7], %s193
        %p195 = pneg %p71
        %p196 = pneg %p68
        %p197 = pneg %p97
        %p198 = pneg %p94
        %s199 = sand.u32 %s84, 1
        %s200 = scalar_lea.sflag [#allocation6], %s199
        %s201 = sand.u32 %s84, 1
        %s202 = smul.addr %s201, 32
        %s203 = scalar_lea.vmem [#allocation9], %s202
        %s204 = smul.u32 16, %s24
        %s205 = smul.u32 2, %s24
        %s206 = smul.u32 16, %s24
        %v207 = vld [vmem:[%s169] sm:$0x3]
        %v208 = vld [vmem:[%s169 + $0x2] sm:$0x3]
        %v209 = vld [vmem:[%s169 + $0x4] sm:$0x3]
        %v210 = vld [vmem:[%s169 + $0x6] sm:$0x3]
        %v211 = vld [vmem:[%s169 + $0x8] sm:$0x3]
        %v212 = vld [vmem:[%s169 + $0xa] sm:$0x3]
        %v213 = vld [vmem:[%s169 + $0xc] sm:$0x3]
        %v214 = vld [vmem:[%s169 + $0xe] sm:$0x3]
        %v215 = vld [vmem:[%s169 + $0x10] sm:$0x3]
        %v216 = vld [vmem:[%s169 + $0x12] sm:$0x3]
        %v217 = vld [vmem:[%s169 + $0x14] sm:$0x3]
        %v218 = vld [vmem:[%s169 + $0x16] sm:$0x3]
        %v219 = vld [vmem:[%s169 + $0x18] sm:$0x3]
        %v220 = vld [vmem:[%s169 + $0x1a] sm:$0x3]
        %v221 = vld [vmem:[%s169 + $0x1c] sm:$0x3]
        %v222 = vld [vmem:[%s169 + $0x1e] sm:$0x3]
        %v223 = vld [vmem:[%s178] sm:$0xff]
        %v224 = vld [vmem:[%s178 + $0x8] sm:$0xff]
        %v227 = vcombine.high %v223, %v223
        %v229 = vunpack.c.l.s4 1966171168
        %v230 = vunpack.c.0.s8 %v229
        %v231 = vlaneseq
        %v232 = vshrl.u32 %v231, 7
        %v233 = vsub.s32 %v230, %v232
        %v234 = vrot.slane %v223, %v233
        %v236 = vunpack.c.l.s4 1966171168
        %v237 = vunpack.c.0.s8 %v236
        %v238 = vlaneseq
        %v239 = vshrl.u32 %v238, 7
        %v240 = vsub.s32 %v237, %v239
        %v241 = vrot.slane %v227, %v240
        %v242 = vcombine.high %v234, %v234
        %v243 = vcombine.high %v241, %v241
        %v245 = vunpack.c.l.s4 1966171168
        %v246 = vunpack.c.0.s8 %v245
        %v247 = vlaneseq
        %v248 = vshrl.u32 %v247, 7
        %v249 = vsub.s32 %v246, %v248
        %v250 = vrot.slane %v234, %v249
        %v252 = vunpack.c.l.s4 1966171168
        %v253 = vunpack.c.0.s8 %v252
        %v254 = vlaneseq
        %v255 = vshrl.u32 %v254, 7
        %v256 = vsub.s32 %v253, %v255
        %v257 = vrot.slane %v241, %v256
        %v259 = vunpack.c.l.s4 1966171168
        %v260 = vunpack.c.0.s8 %v259
        %v261 = vlaneseq
        %v262 = vshrl.u32 %v261, 7
        %v263 = vsub.s32 %v260, %v262
        %v264 = vrot.slane %v242, %v263
        %v266 = vunpack.c.l.s4 1966171168
        %v267 = vunpack.c.0.s8 %v266
        %v268 = vlaneseq
        %v269 = vshrl.u32 %v268, 7
        %v270 = vsub.s32 %v267, %v269
        %v271 = vrot.slane %v243, %v270
        %v272 = vcombine.high %v250, %v250
        %v273 = vcombine.high %v257, %v257
        %v274 = vcombine.high %v264, %v264
        %v275 = vcombine.high %v271, %v271
        %v276 = vcombine.high %v224, %v224
        %v278 = vunpack.c.l.s4 1966171168
        %v279 = vunpack.c.0.s8 %v278
        %v280 = vlaneseq
        %v281 = vshrl.u32 %v280, 7
        %v282 = vsub.s32 %v279, %v281
        %v283 = vrot.slane %v224, %v282
        %v285 = vunpack.c.l.s4 1966171168
        %v286 = vunpack.c.0.s8 %v285
        %v287 = vlaneseq
        %v288 = vshrl.u32 %v287, 7
        %v289 = vsub.s32 %v286, %v288
        %v290 = vrot.slane %v276, %v289
        %v291 = vcombine.high %v283, %v283
        %v292 = vcombine.high %v290, %v290
        %v294 = vunpack.c.l.s4 1966171168
        %v295 = vunpack.c.0.s8 %v294
        %v296 = vlaneseq
        %v297 = vshrl.u32 %v296, 7
        %v298 = vsub.s32 %v295, %v297
        %v299 = vrot.slane %v283, %v298
        %v301 = vunpack.c.l.s4 1966171168
        %v302 = vunpack.c.0.s8 %v301
        %v303 = vlaneseq
        %v304 = vshrl.u32 %v303, 7
        %v305 = vsub.s32 %v302, %v304
        %v306 = vrot.slane %v290, %v305
        %v308 = vunpack.c.l.s4 1966171168
        %v309 = vunpack.c.0.s8 %v308
        %v310 = vlaneseq
        %v311 = vshrl.u32 %v310, 7
        %v312 = vsub.s32 %v309, %v311
        %v313 = vrot.slane %v291, %v312
        %v315 = vunpack.c.l.s4 1966171168
        %v316 = vunpack.c.0.s8 %v315
        %v317 = vlaneseq
        %v318 = vshrl.u32 %v317, 7
        %v319 = vsub.s32 %v316, %v318
        %v320 = vrot.slane %v292, %v319
        %v321 = vcombine.high %v299, %v299
        %v322 = vcombine.high %v306, %v306
        %v323 = vcombine.high %v313, %v313
        %v324 = vcombine.high %v320, %v320
        %v325 = vlaneseq
        %v326 = vshrl.u32 %v325, 7
        %v327 = vsub.s32 0, %v326
        %v328 = vrot.slane %v250, %v327
        %v329 = vlaneseq
        %v330 = vshrl.u32 %v329, 7
        %v331 = vsub.s32 0, %v330
        %v332 = vrot.slane %v264, %v331
        %v333 = vlaneseq
        %v334 = vshrl.u32 %v333, 7
        %v335 = vsub.s32 0, %v334
        %v336 = vrot.slane %v272, %v335
        %v337 = vlaneseq
        %v338 = vshrl.u32 %v337, 7
        %v339 = vsub.s32 0, %v338
        %v340 = vrot.slane %v274, %v339
        %v341 = vlaneseq
        %v342 = vshrl.u32 %v341, 7
        %v343 = vsub.s32 0, %v342
        %v344 = vrot.slane %v257, %v343
        %v345 = vlaneseq
        %v346 = vshrl.u32 %v345, 7
        %v347 = vsub.s32 0, %v346
        %v348 = vrot.slane %v271, %v347
        %v349 = vlaneseq
        %v350 = vshrl.u32 %v349, 7
        %v351 = vsub.s32 0, %v350
        %v352 = vrot.slane %v273, %v351
        %v353 = vlaneseq
        %v354 = vshrl.u32 %v353, 7
        %v355 = vsub.s32 0, %v354
        %v356 = vrot.slane %v275, %v355
        %v357 = vlaneseq
        %v358 = vshrl.u32 %v357, 7
        %v359 = vsub.s32 0, %v358
        %v360 = vrot.slane %v299, %v359
        %v361 = vlaneseq
        %v362 = vshrl.u32 %v361, 7
        %v363 = vsub.s32 0, %v362
        %v364 = vrot.slane %v313, %v363
        %v365 = vlaneseq
        %v366 = vshrl.u32 %v365, 7
        %v367 = vsub.s32 0, %v366
        %v368 = vrot.slane %v321, %v367
        %v369 = vlaneseq
        %v370 = vshrl.u32 %v369, 7
        %v371 = vsub.s32 0, %v370
        %v372 = vrot.slane %v323, %v371
        %v373 = vlaneseq
        %v374 = vshrl.u32 %v373, 7
        %v375 = vsub.s32 0, %v374
        %v376 = vrot.slane %v306, %v375
        %v377 = vlaneseq
        %v378 = vshrl.u32 %v377, 7
        %v379 = vsub.s32 0, %v378
        %v380 = vrot.slane %v320, %v379
        %v381 = vlaneseq
        %v382 = vshrl.u32 %v381, 7
        %v383 = vsub.s32 0, %v382
        %v384 = vrot.slane %v322, %v383
        %v385 = vlaneseq
        %v386 = vshrl.u32 %v385, 7
        %v387 = vsub.s32 0, %v386
        %v388 = vrot.slane %v324, %v387
        %v405 = vadd.f32 %v207, %v328
        %v406 = vadd.f32 %v208, %v332
        %v407 = vadd.f32 %v209, %v336
        %v408 = vadd.f32 %v210, %v340
        %v409 = vadd.f32 %v211, %v344
        %v410 = vadd.f32 %v212, %v348
        %v411 = vadd.f32 %v213, %v352
        %v412 = vadd.f32 %v214, %v356
        %v413 = vadd.f32 %v215, %v360
        %v414 = vadd.f32 %v216, %v364
        %v415 = vadd.f32 %v217, %v368
        %v416 = vadd.f32 %v218, %v372
        %v417 = vadd.f32 %v219, %v376
        %v418 = vadd.f32 %v220, %v380
        %v419 = vadd.f32 %v221, %v384
        %v420 = vadd.f32 %v222, %v388
        %421 = vst [vmem:[%s203] sm:$0x3] %v405
        %422 = vst [vmem:[%s203 + $0x2] sm:$0x3] %v406
        %423 = vst [vmem:[%s203 + $0x4] sm:$0x3] %v407
        %424 = vst [vmem:[%s203 + $0x6] sm:$0x3] %v408
        %425 = vst [vmem:[%s203 + $0x8] sm:$0x3] %v409
        %426 = vst [vmem:[%s203 + $0xa] sm:$0x3] %v410
        %427 = vst [vmem:[%s203 + $0xc] sm:$0x3] %v411
        %428 = vst [vmem:[%s203 + $0xe] sm:$0x3] %v412
        %429 = vst [vmem:[%s203 + $0x10] sm:$0x3] %v413
        %430 = vst [vmem:[%s203 + $0x12] sm:$0x3] %v414
        %431 = vst [vmem:[%s203 + $0x14] sm:$0x3] %v415
        %432 = vst [vmem:[%s203 + $0x16] sm:$0x3] %v416
        %433 = vst [vmem:[%s203 + $0x18] sm:$0x3] %v417
        %434 = vst [vmem:[%s203 + $0x1a] sm:$0x3] %v418
        %435 = vst [vmem:[%s203 + $0x1c] sm:$0x3] %v419
        %436 = vst [vmem:[%s203 + $0x1e] sm:$0x3] %v420
        %s437 = sand.u32 %s84, 1
        %s438 = scalar_lea.sflag [#allocation6], %s437
        %s439 = sand.u32 %s84, 1
        %s440 = smul.addr %s439, 32
        %s441 = scalar_lea.vmem [#allocation9], %s440
        // Predicated region
        $region37: #{tpu_custom_call.1} parent=27 // pred_check
          %p442 = pneg %p94
        $region38: #{tpu_custom_call.1} parent=27 // pred_check_branch
          %444 = sbr.rel (%p442) target = $region40
        $region39: #{tpu_custom_call.1} parent=27 // pred_region
          %s445 = smul.u32 16, %s24
          %s447 = ssub.s32 512, 512
          %448 = vsyncadd %s438, %s447
          %s449 = smul.addr %s445, 32
          %s450 = scalar_lea.hbm %s3, %s449
          %s451 = sshll.u32 %s441, 4
          %s452 = int_to_ptr.vmem [resolvable:$true] %s451
          %457 = dma.vmem_to_hbm [thread:$0]  %s452, 512, %s450, %s438, 32, 32, 2
        $region40: #{tpu_custom_call.1} parent=27 // pred_fallthru
          _
      $region28: #{tpu_custom_call.1} parent=5 // pred_fallthru
        _
      %p458 = scmp.le.s32.totalorder 2, %s19
      // Predicated region
      $region41: #{tpu_custom_call.1} parent=5 // pred_check
        %p459 = pneg %p458
      $region42: #{tpu_custom_call.1} parent=5 // pred_check_branch
        %461 = sbr.rel (%p459) target = $region44
      $region43: #{tpu_custom_call.1} parent=5 // pred_region
        %s462 = ssub.s32 %s19, 2
        // Predicated region
        $region45: #{tpu_custom_call.1} parent=43 // pred_check
          %p463 = pneg %p100
        $region46: #{tpu_custom_call.1} parent=43 // pred_check_branch
          %465 = sbr.rel (%p463) target = $region48
        $region47: #{tpu_custom_call.1} parent=43 // pred_region
          %s466 = sand.u32 %s85, 1
          %s467 = scalar_lea.sflag [#allocation6], %s466
          %s468 = sand.u32 %s85, 1
          %s469 = smul.addr %s468, 32
          %s470 = scalar_lea.vmem [#allocation9], %s469
          %471 = dma.done %s467, 512
        $region48: #{tpu_custom_call.1} parent=43 // pred_fallthru
          _
      $region44: #{tpu_custom_call.1} parent=5 // pred_fallthru
        _
    $region6: #{tpu_custom_call.1} parent=1 // loop_footer
      %s23 = sadd.s32 1, %s19
    $region7: #{tpu_custom_call.1} parent=1 // loop_footer_branch
      %18 = sbr.rel target = $region3
    $region8: #{tpu_custom_call.1} parent=1 // loop_exit
      _
    %472 = vsyncpa [#allocation5], 1
    %s473 = scalar_lea.sflag [#allocation5], 1
    %474 = vsyncpa %s473, 1
    %475 = vsyncpa [#allocation8], 1
    %s476 = scalar_lea.sflag [#allocation8], 1
    %477 = vsyncpa %s476, 1
    %478 = vsyncpa [#allocation6], 1
    %s479 = scalar_lea.sflag [#allocation6], 1
    %480 = vsyncpa %s479, 1

</llo_original>
